<compile_context>
chip_gen: v6e
topology: v6e:2x2x1
jax: 0.10.0
libtpu: 0.0.40
codegen_flags: <defaults>
</compile_context>

<pallas_src>
import functools

import jax
import jax.numpy as jnp
from jax import lax
from jax.experimental import pallas as pl
from jax.experimental.pallas import tpu as pltpu


# ---------------------------------------------------------------------------
# Parameter setup (mirrors BaseCost.__init__ / gen_dx_bx) — plain Python glue.
# ---------------------------------------------------------------------------
def gen_dx_bx(xbound, ybound, zbound):
    dx = [row[2] for row in (xbound, ybound, zbound)]
    bx = [row[0] + row[2] / 2.0 for row in (xbound, ybound, zbound)]
    nx = [int((row[1] - row[0]) / row[2]) for row in (xbound, ybound, zbound)]
    return dx, bx, nx


# ---------------------------------------------------------------------------
# Pallas kernel: one (batch element, N-tile) per grid step.
# ---------------------------------------------------------------------------
def _cost_volume_kernel(xy_ref, cv_ref, out_ref, *,
                        bx0, bx1, dx0, dx1, clamp_h, clamp_w, factor):
    # xy_ref : (1, 2, Nt) f32 — row 0 = x samples, row 1 = y samples (lane axis = N)
    # cv_ref : (1, H, W)  f32 — full BEV plane for this batch element (resident)
    # out_ref: (1, 1, Nt) f32 — lane-dense output row
    C = jnp.clip(cv_ref[0], 0.0, 1000.0)       # clamp BEFORE gather (handles +/-inf)
    H, W = C.shape

    xy = xy_ref[0]                              # (2, Nt)
    xx = xy[0:1, :]                             # (1, Nt)
    yy = xy[1:2, :]                             # (1, Nt)
    Nt = xx.shape[1]

    # PyTorch .long() truncates toward zero; astype(int32) does the same.
    xi = jnp.clip(((xx - bx0) / dx0).astype(jnp.int32), 0, clamp_h - 1)  # row idx
    yi = jnp.clip(((yy - bx1) / dx1).astype(jnp.int32), 0, clamp_w - 1)  # col idx

    # Column gather as a standard MXU one-hot matmul (contracts W, no transpose):
    #   cols[h, n] = C[h, yi[n]]
    col_iota = lax.broadcasted_iota(jnp.int32, (W, Nt), 0)
    col_sel = (col_iota == yi).astype(jnp.float32)                  # (W, Nt)
    cols = jnp.dot(C, col_sel, preferred_element_type=jnp.float32)  # (H, Nt)
    # NOTE: only if profiling at production BEV sizes on v5e shows this f32
    # dot MXU-bound, split C into bf16 hi + lo residual and do 2 bf16 passes.

    # Row gather as a masked sublane (XLU) reduction -> lane-dense (1, Nt).
    row_iota = lax.broadcasted_iota(jnp.int32, (H, Nt), 0)
    cs = jnp.sum(jnp.where(row_iota == xi, cols, 0.0), axis=0, keepdims=True)

    out_ref[0] = (cs * factor).astype(out_ref.dtype)


# ---------------------------------------------------------------------------
# Wrapper: Cost_Volume.forward
# ---------------------------------------------------------------------------
_N_TILE_STEP = 512                     # minimum / granularity of the N tile
_VMEM_BUDGET = 12 * 1024 * 1024        # stay under v5e's 16 MiB scoped default


def _vmem_cost_bytes(n_tile, H, W):
    """Rough VMEM footprint: double-buffered IO + in-kernel intermediates."""
    plane = 2 * H * W * 4                        # double-buffered (1, H, W) plane
    io = 2 * 2 * 8 * n_tile * 4                  # xy-in + out, 2 buffers, sublane-padded
    inter = (2 * H + 2 * W + 16) * n_tile * 4    # one-hot / cols / iota / mask vregs
    return plane + io + inter


def _leading_axis_semantics(batch):
    """CORE_PARALLEL on v7x (2 TensorCores per chip); plain PARALLEL elsewhere."""
    try:
        kind = jax.devices()[0].device_kind.lower()
    except Exception:
        kind = ""
    if batch >= 2 and ("v7" in kind or "7x" in kind) and hasattr(pltpu, "CORE_PARALLEL"):
        return pltpu.CORE_PARALLEL
    return pltpu.PARALLEL


def cost_volume_forward(trajs, cost_volume, grid_conf, factor=100.0):
    """
    trajs:       (B, N, 2) float32
    cost_volume: (B, H, W) float32
    returns:     (B, N)    float32
    """
    B, N, _ = trajs.shape
    _, H, W = cost_volume.shape

    dx, bx, nx = gen_dx_bx(grid_conf["xbound"], grid_conf["ybound"],
                           grid_conf["zbound"])

    # Single wide lane-dense N tile whenever the VMEM budget allows
    # (num_n_tiles == 1 for typical planning N), minimum width 512.
    n_tile = max(_N_TILE_STEP,
                 ((N + _N_TILE_STEP - 1) // _N_TILE_STEP) * _N_TILE_STEP)
    while n_tile > _N_TILE_STEP and _vmem_cost_bytes(n_tile, H, W) > _VMEM_BUDGET:
        n_tile -= _N_TILE_STEP
    n_pad = ((N + n_tile - 1) // n_tile) * n_tile
    num_n_tiles = n_pad // n_tile

    vmem_limit = None
    est = _vmem_cost_bytes(n_tile, H, W)
    if est > _VMEM_BUDGET:
        # Very large BEV plane: raise the scoped limit, but stay well under
        # v7x's 64 MiB physical VMEM.
        vmem_limit = min(int(1.5 * est), 48 * 1024 * 1024)

    # x / y packed into one lane-major array -> a single small DMA per step.
    xy = jnp.transpose(trajs.astype(jnp.float32), (0, 2, 1))        # (B, 2, N)
    xy = jnp.pad(xy, ((0, 0), (0, 0), (0, n_pad - N)))               # (B, 2, N_pad)

    kernel = functools.partial(
        _cost_volume_kernel,
        bx0=float(bx[0]), bx1=float(bx[1]),
        dx0=float(dx[0]), dx1=float(dx[1]),
        clamp_h=int(nx[0]), clamp_w=int(nx[1]),
        factor=float(factor),
    )

    out_full = pl.pallas_call(
        kernel,
        out_shape=jax.ShapeDtypeStruct((B, 1, n_pad), cost_volume.dtype),
        grid_spec=pltpu.PrefetchScalarGridSpec(
            num_scalar_prefetch=0,
            grid=(B, num_n_tiles),
            in_specs=[
                # packed (x, y) samples — lane axis carries N
                pl.BlockSpec((1, 2, n_tile), lambda b, n: (b, 0, n)),
                # index_map independent of n -> the BEV plane stays resident
                # across N tiles.  If profiling on v5e shows the per-batch
                # plane DMA exposed when num_n_tiles == 1, add
                # pipeline_mode=pl.Buffered(3) here.
                pl.BlockSpec((1, H, W), lambda b, n: (b, 0, 0)),
            ],
            out_specs=pl.BlockSpec((1, 1, n_tile), lambda b, n: (b, 0, n)),
        ),
        compiler_params=pltpu.CompilerParams(
            dimension_semantics=(_leading_axis_semantics(B), pltpu.PARALLEL),
            vmem_limit_bytes=vmem_limit,
        ),
    )(xy, cost_volume)

    return out_full[:, 0, :N]


# ---------------------------------------------------------------------------
# Demo / self-check
# ---------------------------------------------------------------------------
if __name__ == "__main__":
    # Small, self-consistent grid config -> 16 x 16 BEV grid.
    grid_conf = dict(
        xbound=[-8.0, 8.0, 1.0],
        ybound=[-8.0, 8.0, 1.0],
        zbound=[-10.0, 10.0, 20.0],
    )
    dx, bx, nx = gen_dx_bx(grid_conf["xbound"], grid_conf["ybound"],
                           grid_conf["zbound"])
    H, W = nx[0], nx[1]          # 16, 16
    B, N = 2, 300                # N=300 -> padded to one 512-wide lane-dense tile

    key = jax.random.PRNGKey(0)
    k1, k2 = jax.random.split(key)
    trajs = jax.random.uniform(k1, (B, N, 2), jnp.float32,
                               minval=-9.0, maxval=9.0)
    cost_volume = jax.random.uniform(k2, (B, H, W), jnp.float32,
                                     minval=-50.0, maxval=1200.0)

    out = jax.block_until_ready(cost_volume_forward(trajs, cost_volume,
                                                    grid_conf))

    # Pure-JAX reference mirroring the PyTorch forward (clamp + discretize +
    # per-batch gather + *100).  B > 1 uses the intended per-batch gather
    # (PyTorch's evaluate() broadcast is only well-defined for B == 1).
    C = jnp.clip(cost_volume, 0.0, 1000.0)
    xi = jnp.clip(((trajs[:, :, 0] - bx[0]) / dx[0]).astype(jnp.int32),
                  0, nx[0] - 1)
    yi = jnp.clip(((trajs[:, :, 1] - bx[1]) / dx[1]).astype(jnp.int32),
                  0, nx[1] - 1)
    ref = C[jnp.arange(B)[:, None], xi, yi] * 100.0

    assert out.shape == (B, N)
    assert jnp.allclose(out, ref, rtol=1e-5, atol=1e-3), (out, ref)
    print("KERNEL_OK")
</pallas_src>

<mosaic_0001>
module attributes {stable_mosaic.version = 11 : i64} {
  func.func @_cost_volume_kernel(%arg0: i32, %arg1: i32, %arg2: memref<1x2x512xf32, #tpu.memory_space<vmem>>, %arg3: memref<1x16x16xf32, #tpu.memory_space<vmem>>, %arg4: memref<1x1x512xf32, #tpu.memory_space<vmem>>) attributes {dimension_semantics = [#tpu.dimension_semantics<parallel>, #tpu.dimension_semantics<parallel>], iteration_bounds = array<i64: 2, 1>, scalar_prefetch = 0 : i64, scratch_operands = 0 : i64, tpu.core_type = #tpu.core_type<tc>, window_params = [{transform_indices = @transform_0, window_bounds = array<i64: 1, 2, 512>}, {transform_indices = @transform_1, window_bounds = array<i64: 1, 16, 16>}, {transform_indices = @transform_2, window_bounds = array<i64: 1, 1, 512>}]} {
    %c0 = arith.constant 0 : index
    %c0_0 = arith.constant 0 : index
    %c0_1 = arith.constant 0 : index
    %0 = vector.load %arg3[%c0, %c0_0, %c0_1] : memref<1x16x16xf32, #tpu.memory_space<vmem>>, vector<1x16x16xf32>
    %1 = vector.shape_cast %0 : vector<1x16x16xf32> to vector<16x16xf32>
    %cst = arith.constant 0.000000e+00 : f32
    %cst_2 = arith.constant 1.000000e+03 : f32
    %2 = vector.broadcast %cst : f32 to vector<16x16xf32>
    %3 = arith.maximumf %2, %1 : vector<16x16xf32>
    %4 = vector.broadcast %cst_2 : f32 to vector<16x16xf32>
    %5 = arith.minimumf %4, %3 : vector<16x16xf32>
    %c0_3 = arith.constant 0 : index
    %c0_4 = arith.constant 0 : index
    %c0_5 = arith.constant 0 : index
    %6 = vector.load %arg2[%c0_3, %c0_4, %c0_5] : memref<1x2x512xf32, #tpu.memory_space<vmem>>, vector<1x2x512xf32>
    %7 = vector.shape_cast %6 : vector<1x2x512xf32> to vector<2x512xf32>
    %8 = vector.extract_strided_slice %7 {offsets = [0, 0], sizes = [1, 512], strides = [1, 1]} : vector<2x512xf32> to vector<1x512xf32>
    %9 = vector.extract_strided_slice %7 {offsets = [1, 0], sizes = [1, 512], strides = [1, 1]} : vector<2x512xf32> to vector<1x512xf32>
    %cst_6 = arith.constant -7.500000e+00 : f32
    %10 = vector.broadcast %cst_6 : f32 to vector<1x512xf32>
    %11 = arith.subf %8, %10 : vector<1x512xf32>
    %cst_7 = arith.constant 1.000000e+00 : f32
    %12 = vector.broadcast %cst_7 : f32 to vector<1x512xf32>
    %13 = arith.divf %11, %12 : vector<1x512xf32>
    %14 = arith.fptosi %13 : vector<1x512xf32> to vector<1x512xi32>
    %c0_i32 = arith.constant 0 : i32
    %c15_i32 = arith.constant 15 : i32
    %15 = vector.broadcast %c0_i32 : i32 to vector<1x512xi32>
    %16 = arith.maxsi %15, %14 : vector<1x512xi32>
    %17 = vector.broadcast %c15_i32 : i32 to vector<1x512xi32>
    %18 = arith.minsi %17, %16 : vector<1x512xi32>
    %cst_8 = arith.constant -7.500000e+00 : f32
    %19 = vector.broadcast %cst_8 : f32 to vector<1x512xf32>
    %20 = arith.subf %9, %19 : vector<1x512xf32>
    %cst_9 = arith.constant 1.000000e+00 : f32
    %21 = vector.broadcast %cst_9 : f32 to vector<1x512xf32>
    %22 = arith.divf %20, %21 : vector<1x512xf32>
    %23 = arith.fptosi %22 : vector<1x512xf32> to vector<1x512xi32>
    %c0_i32_10 = arith.constant 0 : i32
    %c15_i32_11 = arith.constant 15 : i32
    %24 = vector.broadcast %c0_i32_10 : i32 to vector<1x512xi32>
    %25 = arith.maxsi %24, %23 : vector<1x512xi32>
    %26 = vector.broadcast %c15_i32_11 : i32 to vector<1x512xi32>
    %27 = arith.minsi %26, %25 : vector<1x512xi32>
    %28 = tpu.iota {dimensions = array<i32: 0>} : vector<16x512xi32>
    %29 = vector.broadcast %27 : vector<1x512xi32> to vector<16x512xi32>
    %30 = arith.cmpi eq, %28, %29 : vector<16x512xi32>
    %31 = arith.extui %30 : vector<16x512xi1> to vector<16x512xi32>
    %32 = arith.sitofp %31 : vector<16x512xi32> to vector<16x512xf32>
    %cst_12 = arith.constant dense<0.000000e+00> : vector<16x512xf32>
    %33 = tpu.matmul %5, %32, %cst_12 {dimension_numbers = #tpu.dot_dimension_numbers<[1], [0], [0], [1], [0, 0, 1, 1], [], []>} : vector<16x16xf32>, vector<16x512xf32>, vector<16x512xf32> -> vector<16x512xf32>
    %34 = tpu.iota {dimensions = array<i32: 0>} : vector<16x512xi32>
    %35 = vector.broadcast %18 : vector<1x512xi32> to vector<16x512xi32>
    %36 = arith.cmpi eq, %34, %35 : vector<16x512xi32>
    %cst_13 = arith.constant 0.000000e+00 : f32
    %37 = vector.broadcast %cst_13 : f32 to vector<16x512xf32>
    %38 = arith.select %36, %33, %37 : vector<16x512xi1>, vector<16x512xf32>
    %cst_14 = arith.constant dense<0.000000e+00> : vector<512xf32>
    %39 = vector.multi_reduction <add>, %38, %cst_14 [0] : vector<16x512xf32> to vector<512xf32>
    %40 = vector.shape_cast %39 : vector<512xf32> to vector<1x512xf32>
    %cst_15 = arith.constant 1.000000e+02 : f32
    %41 = vector.broadcast %cst_15 : f32 to vector<1x512xf32>
    %42 = arith.mulf %40, %41 : vector<1x512xf32>
    %c0_16 = arith.constant 0 : index
    %c0_17 = arith.constant 0 : index
    %c0_18 = arith.constant 0 : index
    %43 = vector.load %arg4[%c0_16, %c0_17, %c0_18] : memref<1x1x512xf32, #tpu.memory_space<vmem>>, vector<1x1x512xf32>
    %44 = vector.shape_cast %43 : vector<1x1x512xf32> to vector<1x512xf32>
    %45 = vector.shape_cast %42 : vector<1x512xf32> to vector<1x1x512xf32>
    tpu.vector_store %arg4[%c0_16, %c0_17, %c0_18], %45 {strides = array<i32>} : memref<1x1x512xf32, #tpu.memory_space<vmem>>, vector<1x1x512xf32>,
    return
  }
  func.func @transform_0(%arg0: i32, %arg1: i32) -> (i32, i32, i32) {
    %c0_i32 = arith.constant 0 : i32
    %c0_i32_0 = arith.constant 0 : i32
    return %arg0, %c0_i32, %arg1 : i32, i32, i32
  }
  func.func @transform_1(%arg0: i32, %arg1: i32) -> (i32, i32, i32) {
    %c0_i32 = arith.constant 0 : i32
    %c0_i32_0 = arith.constant 0 : i32
    %c0_i32_1 = arith.constant 0 : i32
    return %arg0, %c0_i32, %c0_i32_0 : i32, i32, i32
  }
  func.func @transform_2(%arg0: i32, %arg1: i32) -> (i32, i32, i32) {
    %c0_i32 = arith.constant 0 : i32
    %c0_i32_0 = arith.constant 0 : i32
    return %arg0, %c0_i32, %arg1 : i32, i32, i32
  }
}

</mosaic_0001>

<llo_original>
// kernel: tpu_custom_call.1
$region0: #{tpu_custom_call.1}
  #allocation0 [shape = 'u32[]', space=smem, size = 0x4, offset = 0x4, fixed_abs, tag = 'smem constant byte address 0x4 - core index']
  #allocation1 [shape = 'u32[144,128]{1,0:T(1,128)}', space=vmem, size = 0x12000, scoped, tag = 'internal scratch']
  %s0 = inlined_call_operand.hbm [shape: f32[2,2,512], index: 0, kind: input, shape index: {}]
  %s1 = inlined_call_operand.hbm [shape: f32[2,16,16], index: 1, kind: input, shape index: {}]
  %s2 = inlined_call_operand.hbm [shape: f32[2,1,512], index: 2, kind: output, shape index: {}]
  %s3 = sld [smem:[#allocation0]]
  $region49: #{tpu_custom_call.1} parent=0
    _
  %s5 = ssub.s32 1, %s3
  %s6 = scalar_select 0, %s5, %s3
  $region1: #{tpu_custom_call.1} parent=0
    #allocation2 [shape = 'u8[8192]{0}', space=vmem, size = 0x2000, scoped, tag = 'input window, operand 0']
    #allocation3 [shape = 's32[2]{0}', space=sflag, size = 0x8, scoped, tag = 'scoped memory for tpu_custom_call.1']
    #allocation4 [shape = 's32[2]{0}', space=sflag, size = 0x8, scoped, tag = 'scoped memory for tpu_custom_call.1']
    #allocation5 [shape = 'u8[16384]{0}', space=vmem, size = 0x4000, scoped, tag = 'input window, operand 1']
    #allocation6 [shape = 's32[2]{0}', space=sflag, size = 0x8, scoped, tag = 'scoped memory for tpu_custom_call.1']
    #allocation7 [shape = 'u8[4096]{0}', space=vmem, size = 0x1000, scoped, tag = 'output window, operand 0']
    %7 = vsyncpa [#allocation3], 0
    %s8 = scalar_lea.sflag [#allocation3], 1
    %9 = vsyncpa %s8, 0
    %10 = vsyncpa [#allocation6], 0
    %s11 = scalar_lea.sflag [#allocation6], 1
    %12 = vsyncpa %s11, 0
    %13 = vsyncpa [#allocation4], 0
    %s14 = scalar_lea.sflag [#allocation4], 1
    %15 = vsyncpa %s14, 0
    loop: start=0, step=1, limit=4
    $region2: #{tpu_custom_call.1} parent=1 // loop_pre_header
      _
    $region3: #{tpu_custom_call.1} parent=1 // loop_header
      %s17 = sphi 0, %s21
      %p18 = scmp.ge.s32.totalorder %s17, 4
      %s24 = sphi 0, %s36
      %s25 = sphi 0, %s32
      %s26 = sphi 0, %s24
      %s27 = sphi 0, %s25
      %s28 = sphi 0, %s26
      %s29 = sphi 0, %s27
      %s41 = sphi 0, %s43
      %s44 = sphi 0, %s41
      %s45 = sphi 0, %s44
      %s61 = sphi 0, %s45
      %s67 = sphi 0, %s69
      %s70 = sphi 0, %s67
      %s71 = sphi 0, %s70
      %s87 = sphi 0, %s71
      %s95 = sphi 0, %s97
      %s98 = sphi 0, %s95
      %s99 = sphi 0, %s98
      %s115 = sphi 0, %s99
    $region4: #{tpu_custom_call.1} parent=1 // loop_header_branch
      %20 = sbr.rel (%p18) target = $region8
    $region5: #{tpu_custom_call.1} parent=1 // loop_body
      %s22 = ssub.s32 %s17, 1
      %s23 = ssub.s32 %s17, 2
      %s30 = sadd.s32 1, %s25
      %p31 = scmp.ge.s32.totalorder %s30, 1
      %s32 = scalar_select %p31, 0, %s30
      %s33 = sadd.s32 1, %s24
      %s34 = scalar_select %p31, %s33, %s24
      %p35 = scmp.ge.s32.totalorder %s34, 2
      %s36 = scalar_select %p35, 0, %s34
      %s37 = ssub.s32 %s24, %s36
      %s38 = ssub.s32 %s25, %s32
      %s39 = sor.u32 %s37, %s38
      %p40 = scmp.eq.s32.totalorder %s39, 0
      %s42 = sadd.s32 %s41, 1
      %s43 = scalar_select %p40, %s41, %s42
      %p46 = pneg %p40
      %p47 = scmp.eq.s32.totalorder %s17, 1
      %p48 = por %p46, %p47
      %p49 = scmp.ne.s32.totalorder %s41, %s44
      %p50 = scmp.eq.s32.totalorder %s17, 0
      %p51 = por %p49, %p50
      %p52 = scmp.ne.s32.totalorder %s41, %s44
      %p53 = scmp.eq.s32.totalorder %s22, 1
      %p54 = por %p52, %p53
      %p55 = scmp.ne.s32.totalorder %s44, %s45
      %p56 = scmp.eq.s32.totalorder %s22, 0
      %p57 = por %p55, %p56
      %p58 = scmp.ne.s32.totalorder %s44, %s45
      %p59 = scmp.eq.s32.totalorder %s23, 1
      %p60 = por %p58, %p59
      %p62 = scmp.ne.s32.totalorder %s45, %s61
      %p63 = scmp.eq.s32.totalorder %s23, 0
      %p64 = por %p62, %p63
      %s65 = ssub.s32 %s24, %s36
      %p66 = scmp.eq.s32.totalorder %s65, 0
      %s68 = sadd.s32 %s67, 1
      %s69 = scalar_select %p66, %s67, %s68
      %p72 = pneg %p66
      %p73 = scmp.eq.s32.totalorder %s17, 1
      %p74 = por %p72, %p73
      %p75 = scmp.ne.s32.totalorder %s67, %s70
      %p76 = scmp.eq.s32.totalorder %s17, 0
      %p77 = por %p75, %p76
      %p78 = scmp.ne.s32.totalorder %s67, %s70
      %p79 = scmp.eq.s32.totalorder %s22, 1
      %p80 = por %p78, %p79
      %p81 = scmp.ne.s32.totalorder %s70, %s71
      %p82 = scmp.eq.s32.totalorder %s22, 0
      %p83 = por %p81, %p82
      %p84 = scmp.ne.s32.totalorder %s70, %s71
      %p85 = scmp.eq.s32.totalorder %s23, 1
      %p86 = por %p84, %p85
      %p88 = scmp.ne.s32.totalorder %s71, %s87
      %p89 = scmp.eq.s32.totalorder %s23, 0
      %p90 = por %p88, %p89
      %s91 = ssub.s32 %s24, %s36
      %s92 = ssub.s32 %s25, %s32
      %s93 = sor.u32 %s91, %s92
      %p94 = scmp.eq.s32.totalorder %s93, 0
      %s96 = sadd.s32 %s95, 1
      %s97 = scalar_select %p94, %s95, %s96
      %p100 = pneg %p94
      %p101 = scmp.eq.s32.totalorder %s17, 1
      %p102 = por %p100, %p101
      %p103 = scmp.ne.s32.totalorder %s95, %s98
      %p104 = scmp.eq.s32.totalorder %s17, 0
      %p105 = por %p103, %p104
      %p106 = scmp.ne.s32.totalorder %s95, %s98
      %p107 = scmp.eq.s32.totalorder %s22, 1
      %p108 = por %p106, %p107
      %p109 = scmp.ne.s32.totalorder %s98, %s99
      %p110 = scmp.eq.s32.totalorder %s22, 0
      %p111 = por %p109, %p110
      %p112 = scmp.ne.s32.totalorder %s98, %s99
      %p113 = scmp.eq.s32.totalorder %s23, 1
      %p114 = por %p112, %p113
      %p116 = scmp.ne.s32.totalorder %s99, %s115
      %p117 = scmp.eq.s32.totalorder %s23, 0
      %p118 = por %p116, %p117
      %p119 = scmp.le.s32.totalorder 1, %s17
      %p120 = scmp.lt.s32.totalorder %s17, 3
      %p121 = pnand %p119, %p120
      %p122 = pneg %p121
      // Predicated region
      $region9: #{tpu_custom_call.1} parent=5 // pred_check
        _
      $region10: #{tpu_custom_call.1} parent=5 // pred_check_branch
        %124 = sbr.rel (%p121) target = $region12
      $region11: #{tpu_custom_call.1} parent=5 // pred_region
        %s125 = ssub.s32 %s17, 1
      $region12: #{tpu_custom_call.1} parent=5 // pred_fallthru
        _
      %p126 = scmp.lt.s32.totalorder %s17, 2
      // Predicated region
      $region13: #{tpu_custom_call.1} parent=5 // pred_check
        %p127 = pneg %p126
      $region14: #{tpu_custom_call.1} parent=5 // pred_check_branch
        %129 = sbr.rel (%p127) target = $region16
      $region15: #{tpu_custom_call.1} parent=5 // pred_region
        // Predicated region
        $region17: #{tpu_custom_call.1} parent=15 // pred_check
          %p130 = pneg %p51
        $region18: #{tpu_custom_call.1} parent=15 // pred_check_branch
          %132 = sbr.rel (%p130) target = $region20
        $region19: #{tpu_custom_call.1} parent=15 // pred_region
          %s133 = sand.u32 %s41, 1
          %s134 = scalar_lea.sflag [#allocation3], %s133
          %s135 = sand.u32 %s41, 1
          %s136 = smul.addr %s135, 8
          %s137 = scalar_lea.vmem [#allocation2], %s136
          %s138 = smul.u32 4, %s25
          %s140 = ssub.s32 128, 128
          %141 = vsyncadd %s134, %s140
          %s142 = smul.addr %s24, 4
          %s143 = sadd.s32 %s138, %s142
          %s144 = smul.addr %s143, 32
          %s145 = scalar_lea.hbm %s0, %s144
          %s147 = sshll.u32 %s137, 4
          %s148 = int_to_ptr.vmem [resolvable:$true] %s147
          %150 = dma.hbm_to_vmem [thread:$0]  %s145, 128, %s148, %s134
        $region20: #{tpu_custom_call.1} parent=15 // pred_fallthru
          _
        // Predicated region
        $region21: #{tpu_custom_call.1} parent=15 // pred_check
          %p151 = pneg %p77
        $region22: #{tpu_custom_call.1} parent=15 // pred_check_branch
          %153 = sbr.rel (%p151) target = $region24
        $region23: #{tpu_custom_call.1} parent=15 // pred_region
          %s154 = sand.u32 %s67, 1
          %s155 = scalar_lea.sflag [#allocation6], %s154
          %s156 = sand.u32 %s67, 1
          %s157 = smul.addr %s156, 16
          %s158 = scalar_lea.vmem [#allocation5], %s157
          %s160 = ssub.s32 256, 256
          %161 = vsyncadd %s155, %s160
          %s162 = smul.addr %s24, 2
          %s163 = smul.addr %s162, 128
          %s164 = scalar_lea.hbm %s1, %s163
          %s165 = sshll.u32 %s158, 4
          %s166 = int_to_ptr.vmem [resolvable:$true] %s165
          %171 = dma.hbm_to_vmem [thread:$0]  %s164, 256, %s166, %s155, 128, 128, 8
        $region24: #{tpu_custom_call.1} parent=15 // pred_fallthru
          _
      $region16: #{tpu_custom_call.1} parent=5 // pred_fallthru
        _
      %p172 = scmp.le.s32.totalorder 1, %s17
      %p173 = scmp.lt.s32.totalorder %s17, 3
      %p174 = pnand %p172, %p173
      %p175 = pneg %p174
      // Predicated region
      $region25: #{tpu_custom_call.1} parent=5 // pred_check
        _
      $region26: #{tpu_custom_call.1} parent=5 // pred_check_branch
        %177 = sbr.rel (%p174) target = $region28
      $region27: #{tpu_custom_call.1} parent=5 // pred_region
        %s178 = ssub.s32 %s17, 1
        %s179 = sand.u32 %s44, 1
        %s180 = scalar_lea.sflag [#allocation3], %s179
        %s181 = sand.u32 %s44, 1
        %s182 = smul.addr %s181, 8
        %s183 = scalar_lea.vmem [#allocation2], %s182
        // Predicated region
        $region29: #{tpu_custom_call.1} parent=27 // pred_check
          %p184 = pneg %p57
        $region30: #{tpu_custom_call.1} parent=27 // pred_check_branch
          %186 = sbr.rel (%p184) target = $region32
        $region31: #{tpu_custom_call.1} parent=27 // pred_region
          %187 = dma.done %s180, 128
        $region32: #{tpu_custom_call.1} parent=27 // pred_fallthru
          _
        %s188 = sand.u32 %s70, 1
        %s189 = scalar_lea.sflag [#allocation6], %s188
        %s190 = sand.u32 %s70, 1
        %s191 = smul.addr %s190, 16
        %s192 = scalar_lea.vmem [#allocation5], %s191
        // Predicated region
        $region33: #{tpu_custom_call.1} parent=27 // pred_check
          %p193 = pneg %p83
        $region34: #{tpu_custom_call.1} parent=27 // pred_check_branch
          %195 = sbr.rel (%p193) target = $region36
        $region35: #{tpu_custom_call.1} parent=27 // pred_region
          %196 = dma.done %s189, 256
        $region36: #{tpu_custom_call.1} parent=27 // pred_fallthru
          _
        %s197 = sand.u32 %s44, 1
        %s198 = scalar_lea.sflag [#allocation3], %s197
        %s199 = sand.u32 %s44, 1
        %s200 = smul.addr %s199, 8
        %s201 = scalar_lea.vmem [#allocation2], %s200
        %p202 = pneg %p57
        %p203 = pneg %p54
        %s204 = sand.u32 %s70, 1
        %s205 = scalar_lea.sflag [#allocation6], %s204
        %s206 = sand.u32 %s70, 1
        %s207 = smul.addr %s206, 16
        %s208 = scalar_lea.vmem [#allocation5], %s207
        %p209 = pneg %p83
        %p210 = pneg %p80
        %p211 = pneg %p111
        %p212 = pneg %p108
        %s213 = sand.u32 %s98, 1
        %s214 = scalar_lea.sflag [#allocation4], %s213
        %s215 = sand.u32 %s98, 1
        %s216 = smul.addr %s215, 4
        %s217 = scalar_lea.vmem [#allocation7], %s216
        %s218 = smul.u32 4, %s27
        %s219 = smul.u32 4, %s27
        %v220 = vld [vmem:[%s192] sm:$0xff]
        %v221 = vld [vmem:[%s192 + $0x8] sm:$0xff]
        %v222 = vmax.f32 %v220, 0.0
        %v223 = vmax.f32 %v221, 0.0
        %v224 = vmin.f32 %v222, 1000.0
        %v225 = vmin.f32 %v223, 1000.0
        %v226 = vld [vmem:[%s183] sm:$0xff]
        %v227 = vsub.f32 %v226, -7.5
        %v228 = vcvt.f32.s32.to.zero.pseudo %v227
        %vm229 = vcmp.gt.s32.totalorder %v228, 0
        %v230 = vsel %vm229, %v228, 0
        %vm231 = vcmp.lt.s32.totalorder %v230, 15
        %v232 = vsel %vm231, %v230, 15
        %v233 = vlaneseq
        %v234 = vshrl.u32 %v233, 7
        %v235 = vadd.s32 %v234, 8
        %v236 = vlaneseq
        %v237 = vshrl.u32 %v236, 7
        %v238 = vsub.s32 1, %v237
        %v239 = vrot.slane %v232, %v238
        %v240 = vlaneseq
        %v241 = vshrl.u32 %v240, 7
        %v242 = vsub.s32 3, %v241
        %v243 = vrot.slane %v232, %v242
        %v244 = vlaneseq
        %v245 = vshrl.u32 %v244, 7
        %v246 = vsub.s32 5, %v245
        %v247 = vrot.slane %v232, %v246
        %v248 = vlaneseq
        %v249 = vshrl.u32 %v248, 7
        %v250 = vsub.s32 7, %v249
        %v251 = vrot.slane %v232, %v250
        %v252 = vlaneseq
        %v253 = vshrl.u32 %v252, 7
        %v254 = vsub.s32 1, %v253
        %v255 = vrot.slane %v239, %v254
        %v256 = vlaneseq
        %v257 = vshrl.u32 %v256, 7
        %v258 = vsub.s32 1, %v257
        %v259 = vrot.slane %v243, %v258
        %v260 = vlaneseq
        %v261 = vshrl.u32 %v260, 7
        %v262 = vsub.s32 1, %v261
        %v263 = vrot.slane %v247, %v262
        %v264 = vlaneseq
        %v265 = vshrl.u32 %v264, 7
        %v266 = vsub.s32 1, %v265
        %v267 = vrot.slane %v251, %v266
        %vm268 = vcmp.eq.s32.totalorder %v234, %v255
        %vm269 = vcmp.eq.s32.totalorder %v234, %v259
        %vm270 = vcmp.eq.s32.totalorder %v234, %v263
        %vm271 = vcmp.eq.s32.totalorder %v234, %v267
        %vm272 = vcmp.eq.s32.totalorder %v235, %v255
        %vm273 = vcmp.eq.s32.totalorder %v235, %v259
        %vm274 = vcmp.eq.s32.totalorder %v235, %v263
        %vm275 = vcmp.eq.s32.totalorder %v235, %v267
        %v276 = vsel %vm268, 1, 0
        %v277 = vsel %vm269, 1, 0
        %v278 = vsel %vm270, 1, 0
        %v279 = vsel %vm271, 1, 0
        %v280 = vsel %vm272, 1, 0
        %v281 = vsel %vm273, 1, 0
        %v282 = vsel %vm274, 1, 0
        %v283 = vsel %vm275, 1, 0
        %v284 = vcvt.s32.f32 %v276
        %v285 = vcvt.s32.f32 %v277
        %v286 = vcvt.s32.f32 %v278
        %v287 = vcvt.s32.f32 %v279
        %v288 = vcvt.s32.f32 %v280
        %v289 = vcvt.s32.f32 %v281
        %v290 = vcvt.s32.f32 %v282
        %v291 = vcvt.s32.f32 %v283
        %vm292 = vcmask 130048
        %v294 = vsel %vm292, %v224, 0
        %v297 = vsel %vm292, %v225, 0
        %299 = vmatprep.subr.mxu0 0.0
        %300 = vmatpush1.msra.mxu0 0.0
        %301 = vmatprep.subr.mxu0 0.0
        %302 = vmatpush1.msra.mxu0 0.0
        %303 = vmatprep.subr.mxu0 0.0
        %304 = vmatpush1.msra.mxu0 0.0
        %305 = vmatprep.subr.mxu0 0.0
        %306 = vmatpush1.msra.mxu0 0.0
        %307 = vmatprep.subr.mxu0 0.0
        %308 = vmatpush1.msra.mxu0 0.0
        %309 = vmatprep.subr.mxu0 0.0
        %310 = vmatpush1.msra.mxu0 0.0
        %311 = vmatprep.subr.mxu0 0.0
        %312 = vmatpush1.msra.mxu0 0.0
        %313 = vmatprep.subr.mxu0 0.0
        %314 = vmatpush1.msra.mxu0 0.0
        %315 = vmatprep.subr.mxu0 0.0
        %316 = vmatpush1.msra.mxu0 0.0
        %317 = vmatprep.subr.mxu0 0.0
        %318 = vmatpush1.msra.mxu0 0.0
        %319 = vmatprep.subr.mxu0 0.0
        %320 = vmatpush1.msra.mxu0 0.0
        %321 = vmatprep.subr.mxu0 0.0
        %322 = vmatpush1.msra.mxu0 0.0
        %323 = vmatprep.subr.mxu0 0.0
        %324 = vmatpush1.msra.mxu0 0.0
        %325 = vmatprep.subr.mxu0 0.0
        %326 = vmatpush1.msra.mxu0 0.0
        %327 = vmatprep.subr.mxu0 %v289
        %328 = vmatpush1.msra.mxu0 %v288
        %329 = vmatprep.subr.mxu0 %v285
        %330 = vmatpush1.msra.mxu0 %v284
        %331 = vmatprep.subr.mxu0 0.0
        %332 = vmatpush2.msra.mxu0 0.0
        %333 = vmatprep.subr.mxu0 0.0
        %334 = vmatpush2.msra.mxu0 0.0
        %335 = vmatprep.subr.mxu0 0.0
        %336 = vmatpush2.msra.mxu0 0.0
        %337 = vmatprep.subr.mxu0 0.0
        %338 = vmatpush2.msra.mxu0 0.0
        %339 = vmatprep.subr.mxu0 0.0
        %340 = vmatpush2.msra.mxu0 0.0
        %341 = vmatprep.subr.mxu0 0.0
        %342 = vmatpush2.msra.mxu0 0.0
        %343 = vmatprep.subr.mxu0 0.0
        %344 = vmatpush2.msra.mxu0 0.0
        %345 = vmatprep.subr.mxu0 0.0
        %346 = vmatpush2.msra.mxu0 0.0
        %347 = vmatprep.subr.mxu0 0.0
        %348 = vmatpush2.msra.mxu0 0.0
        %349 = vmatprep.subr.mxu0 0.0
        %350 = vmatpush2.msra.mxu0 0.0
        %351 = vmatprep.subr.mxu0 0.0
        %352 = vmatpush2.msra.mxu0 0.0
        %353 = vmatprep.subr.mxu0 0.0
        %354 = vmatpush2.msra.mxu0 0.0
        %355 = vmatprep.subr.mxu0 0.0
        %356 = vmatpush2.msra.mxu0 0.0
        %357 = vmatprep.subr.mxu0 0.0
        %358 = vmatpush2.msra.mxu0 0.0
        %359 = vmatprep.subr.mxu0 0.0
        %360 = vmatpush2.msra.mxu0 0.0
        %361 = vmatprep.subr.mxu0 0.0
        %362 = vmatpush2.msra.mxu0 0.0
        %363 = vmatprep.mubr.f32.mxu0 0.0
        %364 = vmatmul.mubr.f32.gmra.mxu0 %v294
        %v365 = vpop.f32.mrf.mxu0
        %v366 = vadd.f32 0.0, %v365
        %v367 = vpop.f32.mrf.mxu0
        %v368 = vadd.f32 0.0, %v367
        %369 = vmatprep.mubr.f32.mxu0 0.0
        %370 = vmatmul.mubr.f32.gmra.mxu0 %v297
        %v371 = vpop.f32.mrf.mxu0
        %v372 = vadd.f32 0.0, %v371
        %v373 = vpop.f32.mrf.mxu0
        %v374 = vadd.f32 0.0, %v373
        %375 = vdwg.mxu0
        %376 = vmatprep.subr.mxu0 0.0
        %377 = vmatpush1.msra.mxu0 0.0
        %378 = vmatprep.subr.mxu0 0.0
        %379 = vmatpush1.msra.mxu0 0.0
        %380 = vmatprep.subr.mxu0 0.0
        %381 = vmatpush1.msra.mxu0 0.0
        %382 = vmatprep.subr.mxu0 0.0
        %383 = vmatpush1.msra.mxu0 0.0
        %384 = vmatprep.subr.mxu0 0.0
        %385 = vmatpush1.msra.mxu0 0.0
        %386 = vmatprep.subr.mxu0 0.0
        %387 = vmatpush1.msra.mxu0 0.0
        %388 = vmatprep.subr.mxu0 0.0
        %389 = vmatpush1.msra.mxu0 0.0
        %390 = vmatprep.subr.mxu0 0.0
        %391 = vmatpush1.msra.mxu0 0.0
        %392 = vmatprep.subr.mxu0 0.0
        %393 = vmatpush1.msra.mxu0 0.0
        %394 = vmatprep.subr.mxu0 0.0
        %395 = vmatpush1.msra.mxu0 0.0
        %396 = vmatprep.subr.mxu0 0.0
        %397 = vmatpush1.msra.mxu0 0.0
        %398 = vmatprep.subr.mxu0 0.0
        %399 = vmatpush1.msra.mxu0 0.0
        %400 = vmatprep.subr.mxu0 0.0
        %401 = vmatpush1.msra.mxu0 0.0
        %402 = vmatprep.subr.mxu0 0.0
        %403 = vmatpush1.msra.mxu0 0.0
        %404 = vmatprep.subr.mxu0 %v291
        %405 = vmatpush1.msra.mxu0 %v290
        %406 = vmatprep.subr.mxu0 %v287
        %407 = vmatpush1.msra.mxu0 %v286
        %408 = vmatprep.subr.mxu0 0.0
        %409 = vmatpush2.msra.mxu0 0.0
        %410 = vmatprep.subr.mxu0 0.0
        %411 = vmatpush2.msra.mxu0 0.0
        %412 = vmatprep.subr.mxu0 0.0
        %413 = vmatpush2.msra.mxu0 0.0
        %414 = vmatprep.subr.mxu0 0.0
        %415 = vmatpush2.msra.mxu0 0.0
        %416 = vmatprep.subr.mxu0 0.0
        %417 = vmatpush2.msra.mxu0 0.0
        %418 = vmatprep.subr.mxu0 0.0
        %419 = vmatpush2.msra.mxu0 0.0
        %420 = vmatprep.subr.mxu0 0.0
        %421 = vmatpush2.msra.mxu0 0.0
        %422 = vmatprep.subr.mxu0 0.0
        %423 = vmatpush2.msra.mxu0 0.0
        %424 = vmatprep.subr.mxu0 0.0
        %425 = vmatpush2.msra.mxu0 0.0
        %426 = vmatprep.subr.mxu0 0.0
        %427 = vmatpush2.msra.mxu0 0.0
        %428 = vmatprep.subr.mxu0 0.0
        %429 = vmatpush2.msra.mxu0 0.0
        %430 = vmatprep.subr.mxu0 0.0
        %431 = vmatpush2.msra.mxu0 0.0
        %432 = vmatprep.subr.mxu0 0.0
        %433 = vmatpush2.msra.mxu0 0.0
        %434 = vmatprep.subr.mxu0 0.0
        %435 = vmatpush2.msra.mxu0 0.0
        %436 = vmatprep.subr.mxu0 0.0
        %437 = vmatpush2.msra.mxu0 0.0
        %438 = vmatprep.subr.mxu0 0.0
        %439 = vmatpush2.msra.mxu0 0.0
        %440 = vmatprep.mubr.f32.mxu0 0.0
        %441 = vmatmul.mubr.f32.gmra.mxu0 %v294
        %v442 = vpop.f32.mrf.mxu0
        %v443 = vadd.f32 0.0, %v442
        %v444 = vpop.f32.mrf.mxu0
        %v445 = vadd.f32 0.0, %v444
        %446 = vmatprep.mubr.f32.mxu0 0.0
        %447 = vmatmul.mubr.f32.gmra.mxu0 %v297
        %v448 = vpop.f32.mrf.mxu0
        %v449 = vadd.f32 0.0, %v448
        %v450 = vpop.f32.mrf.mxu0
        %v451 = vadd.f32 0.0, %v450
        %452 = vdwg.mxu0
        %v453 = vlaneseq
        %v454 = vshrl.u32 %v453, 7
        %v455 = vsub.s32 0, %v454
        %v456 = vrot.slane %v232, %v455
        %v457 = vlaneseq
        %v458 = vshrl.u32 %v457, 7
        %v459 = vsub.s32 2, %v458
        %v460 = vrot.slane %v232, %v459
        %v461 = vlaneseq
        %v462 = vshrl.u32 %v461, 7
        %v463 = vsub.s32 4, %v462
        %v464 = vrot.slane %v232, %v463
        %v465 = vlaneseq
        %v466 = vshrl.u32 %v465, 7
        %v467 = vsub.s32 6, %v466
        %v468 = vrot.slane %v232, %v467
        %v469 = vlaneseq
        %v470 = vshrl.u32 %v469, 7
        %v471 = vsub.s32 0, %v470
        %v472 = vrot.slane %v456, %v471
        %v473 = vlaneseq
        %v474 = vshrl.u32 %v473, 7
        %v475 = vsub.s32 0, %v474
        %v476 = vrot.slane %v460, %v475
        %v477 = vlaneseq
        %v478 = vshrl.u32 %v477, 7
        %v479 = vsub.s32 0, %v478
        %v480 = vrot.slane %v464, %v479
        %v481 = vlaneseq
        %v482 = vshrl.u32 %v481, 7
        %v483 = vsub.s32 0, %v482
        %v484 = vrot.slane %v468, %v483
        %vm485 = vcmp.eq.s32.totalorder %v234, %v472
        %vm486 = vcmp.eq.s32.totalorder %v234, %v476
        %vm487 = vcmp.eq.s32.totalorder %v234, %v480
        %vm488 = vcmp.eq.s32.totalorder %v234, %v484
        %vm489 = vcmp.eq.s32.totalorder %v235, %v472
        %vm490 = vcmp.eq.s32.totalorder %v235, %v476
        %vm491 = vcmp.eq.s32.totalorder %v235, %v480
        %vm492 = vcmp.eq.s32.totalorder %v235, %v484
        %v493 = vsel %vm485, %v366, 0.0
        %v494 = vsel %vm486, %v368, 0.0
        %v495 = vsel %vm487, %v443, 0.0
        %v496 = vsel %vm488, %v445, 0.0
        %v497 = vsel %vm489, %v372, 0.0
        %v498 = vsel %vm490, %v374, 0.0
        %v499 = vsel %vm491, %v449, 0.0
        %v500 = vsel %vm492, %v451, 0.0
        %v501 = vadd.f32 %v493, %v497
        %v502 = vrot.slane %v501, 4
        %v503 = vadd.f32 %v501, %v502
        %v504 = vrot.slane %v503, 2
        %v505 = vadd.f32 %v503, %v504
        %v506 = vrot.slane %v505, 1
        %v507 = vadd.f32 %v505, %v506
        %v508 = vadd.f32 %v494, %v498
        %v509 = vrot.slane %v508, 4
        %v510 = vadd.f32 %v508, %v509
        %v511 = vrot.slane %v510, 2
        %v512 = vadd.f32 %v510, %v511
        %v513 = vrot.slane %v512, 1
        %v514 = vadd.f32 %v512, %v513
        %v515 = vadd.f32 %v495, %v499
        %v516 = vrot.slane %v515, 4
        %v517 = vadd.f32 %v515, %v516
        %v518 = vrot.slane %v517, 2
        %v519 = vadd.f32 %v517, %v518
        %v520 = vrot.slane %v519, 1
        %v521 = vadd.f32 %v519, %v520
        %v522 = vadd.f32 %v496, %v500
        %v523 = vrot.slane %v522, 4
        %v524 = vadd.f32 %v522, %v523
        %v525 = vrot.slane %v524, 2
        %v526 = vadd.f32 %v524, %v525
        %v527 = vrot.slane %v526, 1
        %v528 = vadd.f32 %v526, %v527
        %v529 = vmul.f32 %v507, 100.0
        %v530 = vmul.f32 %v514, 100.0
        %v531 = vmul.f32 %v521, 100.0
        %v532 = vmul.f32 %v528, 100.0
        %v537 = vcombine.low %v529, %v530
        %v538 = vcombine.low %v531, %v532
        %v540 = vunpack.c.l.s4 1966171168
        %v541 = vunpack.c.0.s8 %v540
        %v542 = vlaneseq
        %v543 = vshrl.u32 %v542, 7
        %v544 = vsub.s32 %v541, %v543
        %v545 = vrot.slane %v537, %v544
        %v547 = vunpack.c.l.s4 1966171168
        %v548 = vunpack.c.0.s8 %v547
        %v549 = vlaneseq
        %v550 = vshrl.u32 %v549, 7
        %v551 = vsub.s32 %v548, %v550
        %v552 = vrot.slane %v538, %v551
        %v553 = vcombine.low %v545, %v552
        %v555 = vunpack.c.l.s4 1966171168
        %v556 = vunpack.c.0.s8 %v555
        %v557 = vlaneseq
        %v558 = vshrl.u32 %v557, 7
        %v559 = vsub.s32 %v556, %v558
        %v560 = vrot.slane %v553, %v559
        %v562 = vlaneseq
        %vm563 = vcmp.ge.s32.totalorder %v562, 0
        %vm564 = vcmp.lt.s32.totalorder %v562, 512
        %vm565 = vmand %vm563, %vm564
        %566 = vst.msk [vmem:[%s217] sm:$0xf] %vm565, %v560
        %s567 = sand.u32 %s98, 1
        %s568 = scalar_lea.sflag [#allocation4], %s567
        %s569 = sand.u32 %s98, 1
        %s570 = smul.addr %s569, 4
        %s571 = scalar_lea.vmem [#allocation7], %s570
        // Predicated region
        $region37: #{tpu_custom_call.1} parent=27 // pred_check
          %p572 = pneg %p108
        $region38: #{tpu_custom_call.1} parent=27 // pred_check_branch
          %574 = sbr.rel (%p572) target = $region40
        $region39: #{tpu_custom_call.1} parent=27 // pred_region
          %s575 = smul.u32 4, %s27
          %s577 = ssub.s32 64, 64
          %578 = vsyncadd %s568, %s577
          %s579 = smul.addr %s26, 4
          %s580 = sadd.s32 %s575, %s579
          %s581 = smul.addr %s580, 16
          %s582 = scalar_lea.hbm %s2, %s581
          %s584 = sshll.u32 %s571, 4
          %s585 = int_to_ptr.vmem [resolvable:$true] %s584
          %587 = dma.vmem_to_hbm [thread:$0]  %s585, 64, %s582, %s568
        $region40: #{tpu_custom_call.1} parent=27 // pred_fallthru
          _
      $region28: #{tpu_custom_call.1} parent=5 // pred_fallthru
        _
      %p588 = scmp.le.s32.totalorder 2, %s17
      // Predicated region
      $region41: #{tpu_custom_call.1} parent=5 // pred_check
        %p589 = pneg %p588
      $region42: #{tpu_custom_call.1} parent=5 // pred_check_branch
        %591 = sbr.rel (%p589) target = $region44
      $region43: #{tpu_custom_call.1} parent=5 // pred_region
        %s592 = ssub.s32 %s17, 2
        // Predicated region
        $region45: #{tpu_custom_call.1} parent=43 // pred_check
          %p593 = pneg %p114
        $region46: #{tpu_custom_call.1} parent=43 // pred_check_branch
          %595 = sbr.rel (%p593) target = $region48
        $region47: #{tpu_custom_call.1} parent=43 // pred_region
          %s596 = sand.u32 %s99, 1
          %s597 = scalar_lea.sflag [#allocation4], %s596
          %s598 = sand.u32 %s99, 1
          %s599 = smul.addr %s598, 4
          %s600 = scalar_lea.vmem [#allocation7], %s599
          %601 = dma.done %s597, 64
        $region48: #{tpu_custom_call.1} parent=43 // pred_fallthru
          _
      $region44: #{tpu_custom_call.1} parent=5 // pred_fallthru
        _
    $region6: #{tpu_custom_call.1} parent=1 // loop_footer
      %s21 = sadd.s32 1, %s17
    $region7: #{tpu_custom_call.1} parent=1 // loop_footer_branch
      %16 = sbr.rel target = $region3
    $region8: #{tpu_custom_call.1} parent=1 // loop_exit
      _
    %602 = vsyncpa [#allocation3], 1
    %s603 = scalar_lea.sflag [#allocation3], 1
    %604 = vsyncpa %s603, 1
    %605 = vsyncpa [#allocation6], 1
    %s606 = scalar_lea.sflag [#allocation6], 1
    %607 = vsyncpa %s606, 1
    %608 = vsyncpa [#allocation4], 1
    %s609 = scalar_lea.sflag [#allocation4], 1
    %610 = vsyncpa %s609, 1

</llo_original>
